<compile_context>
chip_gen: v5e
topology: v5e:2x2
jax: 0.10.0
libtpu: 0.0.40
codegen_flags: <defaults>
</compile_context>

<pallas_src>
import functools

import jax
import jax.numpy as jnp
from jax.experimental import pallas as pl
from jax.experimental.pallas import tpu as pltpu

_MIB = 1024 * 1024


def _ce_label_smooth_kernel(logits_ref, targets_ref, out_ref, *,
                            epsilon: float, num_classes: int,
                            batch: int, tile_b: int):
    i = pl.program_id(0)

    x = logits_ref[...].astype(jnp.float32)          # (TB, C)
    t = targets_ref[...]                             # (TB, 1) int32

    # Numerically-stable log-softmax pieces along the class axis.
    m = jnp.max(x, axis=1, keepdims=True)            # (TB, 1)
    shifted = x - m                                  # (TB, C)
    sumexp = jnp.sum(jnp.exp(shifted), axis=1, keepdims=True)
    lse = jnp.log(sumexp)                            # (TB, 1)

    # shifted[i, t_i] via a masked class-sum (no materialized one-hot floats).
    class_ids = jax.lax.broadcasted_iota(jnp.int32, x.shape, 1)
    tgt_shifted = jnp.sum(
        jnp.where(class_ids == t, shifted, 0.0), axis=1, keepdims=True)
    row_sum_shifted = jnp.sum(shifted, axis=1, keepdims=True)

    c = float(num_classes)
    # Folded label-smoothing loss per row:
    #   loss_i = -(1-eps)*(shifted[i,t_i]-lse_i) - (eps/C)*(sum_j shifted[i,j]-C*lse_i)
    loss = (-(1.0 - epsilon) * (tgt_shifted - lse)
            - (epsilon / c) * (row_sum_shifted - c * lse))      # (TB, 1)

    # Mask rows past the true batch (ragged last tile; OOB rows are garbage).
    row_ids = i * tile_b + jax.lax.broadcasted_iota(jnp.int32, loss.shape, 0)
    loss = jnp.where(row_ids < batch, loss, 0.0)

    # Per-tile partial sum -> SMEM scalar (no lane-masked VMEM store).
    out_ref[0, 0] = jnp.sum(loss)


def _hw_info():
    """(vmem_capacity_bytes, is_v7x, is_v5e) with safe fallbacks."""
    vmem_cap = 128 * _MIB
    kind = ""
    try:
        vmem_cap = int(pltpu.get_tpu_info().vmem_capacity_bytes)
    except Exception:
        pass
    try:
        kind = jax.devices()[0].device_kind.lower()
    except Exception:
        pass
    is_v7 = ("v7" in kind) or (vmem_cap <= 64 * _MIB)
    is_v5e = ("v5e" in kind) or ("v5 lite" in kind) or ("v5litepod" in kind)
    if is_v7:
        vmem_cap = min(vmem_cap, 64 * _MIB)   # 64 MiB per TensorCore on v7x
    return vmem_cap, is_v7, is_v5e


def _sublane_multiple(dtype) -> int:
    itemsize = jnp.dtype(dtype).itemsize
    if itemsize >= 4:
        return 8
    if itemsize == 2:
        return 16
    return 32


def _plan_tiling(batch, num_classes, dtype, tile_b=None):
    """Dtype/generation-aware plan. Returns (tile_b, num_buffers, vmem_limit)."""
    itemsize = jnp.dtype(dtype).itemsize
    sub = _sublane_multiple(dtype)
    vmem_cap, is_v7, is_v5e = _hw_info()

    if is_v7:
        per_buf_budget, total_budget = 4 * _MIB, 48 * _MIB
    elif is_v5e:
        per_buf_budget, total_budget = 2 * _MIB, 64 * _MIB
    else:  # v6e and unknown/default
        per_buf_budget, total_budget = 8 * _MIB, 96 * _MIB

    row_in = num_classes * itemsize          # one logits row, HBM dtype
    row_tmp = num_classes * 4 * 5            # ~5 f32 (TB, C) kernel temporaries

    if tile_b is None:
        rows_by_buf = max(per_buf_budget // max(row_in, 1), 1)
        rows_by_total = max((total_budget - _MIB) // (2 * row_in + 8 + row_tmp), 1)
        rows = max(min(rows_by_buf, rows_by_total), 1)
        rows = max((rows // sub) * sub, sub)
        # Guarantee >= 2 grid steps when the batch allows it, so both v7x
        # TensorCores get work (negligible ~0.35us extra step on v5e/v6e).
        if batch >= 2 * sub:
            half = -(-batch // 2)
            half = -(-half // sub) * sub
            rows = min(rows, half)
        b_ceil = -(-batch // sub) * sub
        tile_b = min(rows, b_ceil)
    tile_b = int(tile_b)

    num_tiles = -(-batch // tile_b)
    tile_bytes = tile_b * row_in
    # Third pipeline buffer hides DMA-issue jitter when per-tile compute is tiny.
    num_buffers = 3 if (tile_bytes < 512 * 1024 and num_tiles >= 3) else 2

    planned = (num_buffers * tile_bytes          # pipelined logits tiles
               + num_buffers * tile_b * 4        # pipelined targets tiles
               + tile_b * row_tmp                # in-kernel f32 temporaries
               + _MIB)                           # slack
    vmem_limit = int(min(max(planned, 32 * _MIB), vmem_cap - 8 * _MIB))

    # TODO(synk): for vocab-scale C (>= ~32k classes) add an "arbitrary"
    # class-split grid axis with an online (flash-style) running max /
    # sum-of-exp; the per-tile `sub`-row floor can exceed VMEM budgets there
    # (soonest on v7x with 64 MiB/TC).
    return tile_b, num_buffers, vmem_limit


def cross_entropy_label_smooth(inputs, targets, *, num_classes, epsilon=0.1,
                               tile_b=None):
    """Pallas implementation of CrossEntropyLabelSmooth.forward.

    inputs:  (B, num_classes) float logits.  bf16 logits are supported (and
             encouraged: they halve HBM traffic on this memory-bound kernel;
             the math is done in f32 inside VMEM).
    targets: (B,) integer class indices
    returns: scalar float32 mean loss
    """
    B, C = inputs.shape
    assert C == num_classes

    tile_b, num_buffers, vmem_limit = _plan_tiling(B, C, inputs.dtype, tile_b)
    num_tiles = pl.cdiv(B, tile_b)

    targets_2d = targets.reshape(B, 1).astype(jnp.int32)

    kernel = functools.partial(
        _ce_label_smooth_kernel,
        epsilon=float(epsilon),
        num_classes=int(num_classes),
        batch=int(B),
        tile_b=int(tile_b),
    )

    itemsize = jnp.dtype(inputs.dtype).itemsize
    cost = pl.CostEstimate(
        flops=int(5 * B * C),
        transcendentals=int(B * C),
        bytes_accessed=int(B * C * itemsize + B * 4 + num_tiles * 4),
    )

    def _call(logits_spec):
        return pl.pallas_call(
            kernel,
            out_shape=jax.ShapeDtypeStruct((num_tiles, 1), jnp.float32),
            grid=(num_tiles,),
            in_specs=[
                logits_spec,
                pl.BlockSpec((tile_b, 1), lambda i: (i, 0)),
            ],
            out_specs=pl.BlockSpec((1, 1), lambda i: (i, 0),
                                   memory_space=pltpu.MemorySpace.SMEM),
            compiler_params=pltpu.CompilerParams(
                dimension_semantics=("parallel",),
                vmem_limit_bytes=int(vmem_limit)),
            cost_estimate=cost,
        )(inputs, targets_2d)

    default_spec = pl.BlockSpec((tile_b, C), lambda i: (i, 0))
    if num_buffers > 2:
        try:
            partials = _call(
                pl.BlockSpec((tile_b, C), lambda i: (i, 0),
                             pipeline_mode=pl.Buffered(num_buffers)))
        except Exception:
            partials = _call(default_spec)
    else:
        partials = _call(default_spec)

    # Final mean over the *global* batch size, outside the kernel.
    return jnp.sum(partials) / B


def _reference(inputs, targets, *, num_classes, epsilon=0.1):
    log_probs = jax.nn.log_softmax(inputs.astype(jnp.float32), axis=1)
    one_hot = jax.nn.one_hot(targets, num_classes, dtype=jnp.float32)
    smoothed = (1.0 - epsilon) * one_hot + epsilon / num_classes
    return jnp.mean(jnp.sum(-smoothed * log_probs, axis=1))


if __name__ == "__main__":
    EPSILON = 0.1
    key = jax.random.PRNGKey(0)
    k_logits, k_targets = jax.random.split(key)

    # Case 1: small f32 case consistent with the module (B=8, C=16).
    B, NUM_CLASSES = 8, 16
    logits = jax.random.normal(k_logits, (B, NUM_CLASSES), dtype=jnp.float32)
    targets = jax.random.randint(k_targets, (B,), 0, NUM_CLASSES, dtype=jnp.int32)
    loss = jax.block_until_ready(
        cross_entropy_label_smooth(logits, targets,
                                   num_classes=NUM_CLASSES, epsilon=EPSILON))
    ref = _reference(logits, targets, num_classes=NUM_CLASSES, epsilon=EPSILON)
    assert jnp.allclose(loss, ref, rtol=1e-5, atol=1e-5), (loss, ref)

    # Case 2: B not a multiple of the tile (ragged last block, no jnp.pad).
    B2 = 37
    logits2 = jax.random.normal(k_logits, (B2, NUM_CLASSES), dtype=jnp.float32)
    targets2 = jax.random.randint(k_targets, (B2,), 0, NUM_CLASSES, dtype=jnp.int32)
    loss2 = jax.block_until_ready(
        cross_entropy_label_smooth(logits2, targets2, num_classes=NUM_CLASSES,
                                   epsilon=EPSILON, tile_b=16))
    ref2 = _reference(logits2, targets2, num_classes=NUM_CLASSES, epsilon=EPSILON)
    assert jnp.allclose(loss2, ref2, rtol=1e-5, atol=1e-5), (loss2, ref2)

    # Case 3: bf16 logits (dtype-aware sublane rounding, halved HBM traffic).
    B3, C3 = 24, 128
    logits3 = jax.random.normal(k_logits, (B3, C3), dtype=jnp.float32)
    targets3 = jax.random.randint(k_targets, (B3,), 0, C3, dtype=jnp.int32)
    loss3 = jax.block_until_ready(
        cross_entropy_label_smooth(logits3.astype(jnp.bfloat16), targets3,
                                   num_classes=C3, epsilon=EPSILON))
    ref3 = _reference(logits3.astype(jnp.bfloat16), targets3,
                      num_classes=C3, epsilon=EPSILON)
    assert jnp.allclose(loss3, ref3, rtol=1e-4, atol=1e-4), (loss3, ref3)

    print("KERNEL_OK")
</pallas_src>

<mosaic_0001>
module attributes {stable_mosaic.version = 11 : i64} {
  func.func @_ce_label_smooth_kernel(%arg0: i32, %arg1: memref<8x16xf32, #tpu.memory_space<vmem>>, %arg2: memref<8x1xi32, #tpu.memory_space<vmem>>, %arg3: memref<1x1xf32, #tpu.memory_space<smem>>) attributes {dimension_semantics = [#tpu.dimension_semantics<parallel>], iteration_bounds = array<i64: 1>, scalar_prefetch = 0 : i64, scratch_operands = 0 : i64, tpu.core_type = #tpu.core_type<tc>, window_params = [{transform_indices = @transform_0, window_bounds = array<i64: 8, 16>}, {transform_indices = @transform_1, window_bounds = array<i64: 8, 1>}, {transform_indices = @transform_2, window_bounds = array<i64: 1, 1>}]} {
    %c0 = arith.constant 0 : index
    %c0_0 = arith.constant 0 : index
    %0 = vector.load %arg1[%c0, %c0_0] : memref<8x16xf32, #tpu.memory_space<vmem>>, vector<8x16xf32>
    %c0_1 = arith.constant 0 : index
    %c0_2 = arith.constant 0 : index
    %1 = vector.load %arg2[%c0_1, %c0_2] : memref<8x1xi32, #tpu.memory_space<vmem>>, vector<8x1xi32>
    %cst = arith.constant dense<0xFF800000> : vector<8xf32>
    %2 = vector.multi_reduction <maximumf>, %0, %cst [1] : vector<8x16xf32> to vector<8xf32>
    %3 = vector.shape_cast %2 : vector<8xf32> to vector<8x1xf32>
    %4 = vector.broadcast %3 : vector<8x1xf32> to vector<8x16xf32>
    %5 = arith.subf %0, %4 : vector<8x16xf32>
    %6 = math.exp %5 : vector<8x16xf32>
    %cst_3 = arith.constant dense<0.000000e+00> : vector<8xf32>
    %7 = vector.multi_reduction <add>, %6, %cst_3 [1] : vector<8x16xf32> to vector<8xf32>
    %8 = vector.shape_cast %7 : vector<8xf32> to vector<8x1xf32>
    %9 = math.log %8 : vector<8x1xf32>
    %10 = tpu.iota {dimensions = array<i32: 1>} : vector<8x16xi32>
    %11 = vector.broadcast %1 : vector<8x1xi32> to vector<8x16xi32>
    %12 = arith.cmpi eq, %10, %11 : vector<8x16xi32>
    %cst_4 = arith.constant 0.000000e+00 : f32
    %13 = vector.broadcast %cst_4 : f32 to vector<8x16xf32>
    %14 = arith.select %12, %5, %13 : vector<8x16xi1>, vector<8x16xf32>
    %cst_5 = arith.constant dense<0.000000e+00> : vector<8xf32>
    %15 = vector.multi_reduction <add>, %14, %cst_5 [1] : vector<8x16xf32> to vector<8xf32>
    %16 = vector.shape_cast %15 : vector<8xf32> to vector<8x1xf32>
    %cst_6 = arith.constant dense<0.000000e+00> : vector<8xf32>
    %17 = vector.multi_reduction <add>, %5, %cst_6 [1] : vector<8x16xf32> to vector<8xf32>
    %18 = vector.shape_cast %17 : vector<8xf32> to vector<8x1xf32>
    %19 = arith.subf %16, %9 : vector<8x1xf32>
    %cst_7 = arith.constant -0.899999976 : f32
    %20 = vector.broadcast %cst_7 : f32 to vector<8x1xf32>
    %21 = arith.mulf %20, %19 : vector<8x1xf32>
    %cst_8 = arith.constant 1.600000e+01 : f32
    %22 = vector.broadcast %cst_8 : f32 to vector<8x1xf32>
    %23 = arith.mulf %22, %9 : vector<8x1xf32>
    %24 = arith.subf %18, %23 : vector<8x1xf32>
    %cst_9 = arith.constant 6.250000e-03 : f32
    %25 = vector.broadcast %cst_9 : f32 to vector<8x1xf32>
    %26 = arith.mulf %25, %24 : vector<8x1xf32>
    %27 = arith.subf %21, %26 : vector<8x1xf32>
    %c8_i32 = arith.constant 8 : i32
    %28 = arith.muli %arg0, %c8_i32 : i32
    %29 = tpu.iota {dimensions = array<i32: 0>} : vector<8x1xi32>
    %30 = vector.broadcast %28 : i32 to vector<8x1xi32>
    %31 = arith.addi %30, %29 : vector<8x1xi32>
    %c8_i32_10 = arith.constant 8 : i32
    %32 = vector.broadcast %c8_i32_10 : i32 to vector<8x1xi32>
    %33 = arith.cmpi slt, %31, %32 : vector<8x1xi32>
    %cst_11 = arith.constant 0.000000e+00 : f32
    %34 = vector.broadcast %cst_11 : f32 to vector<8x1xf32>
    %35 = arith.select %33, %27, %34 : vector<8x1xi1>, vector<8x1xf32>
    %36 = vector.shape_cast %35 : vector<8x1xf32> to vector<1x8x1xf32>
    %cst_12 = arith.constant dense<0.000000e+00> : vector<1xf32>
    %37 = vector.multi_reduction <add>, %36, %cst_12 [1, 2] : vector<1x8x1xf32> to vector<1xf32>
    %38 = vector.shape_cast %37 : vector<1xf32> to vector<1x1x1xf32>
    %39 = vector.extract %38[0, 0, 0] : f32 from vector<1x1x1xf32>
    %c0_13 = arith.constant 0 : index
    %c0_14 = arith.constant 0 : index
    %40 = memref.load %arg3[%c0_13, %c0_14] : memref<1x1xf32, #tpu.memory_space<smem>>
    memref.store %39, %arg3[%c0_13, %c0_14] : memref<1x1xf32, #tpu.memory_space<smem>>
    return
  }
  func.func @transform_0(%arg0: i32) -> (i32, i32) {
    %c0_i32 = arith.constant 0 : i32
    %c0_i32_0 = arith.constant 0 : i32
    return %arg0, %c0_i32 : i32, i32
  }
  func.func @transform_1(%arg0: i32) -> (i32, i32) {
    %c0_i32 = arith.constant 0 : i32
    %c0_i32_0 = arith.constant 0 : i32
    return %arg0, %c0_i32 : i32, i32
  }
  func.func @transform_2(%arg0: i32) -> (i32, i32) {
    %c0_i32 = arith.constant 0 : i32
    %c0_i32_0 = arith.constant 0 : i32
    return %arg0, %c0_i32 : i32, i32
  }
}

</mosaic_0001>

<llo_original>
// kernel: tpu_custom_call.1
$region0: #{tpu_custom_call.1}
  #allocation0 [shape = 'u32[]', space=smem, size = 0x4, offset = 0x4, fixed_abs, tag = 'smem constant byte address 0x4 - core index']
  #allocation1 [shape = 'u32[72,128]{1,0:T(1,128)}', space=vmem, size = 0x9000, scoped, tag = 'internal scratch']
  %s0 = inlined_call_operand.vmem [shape: f32[8,16], index: 0, kind: input, shape index: {}]
  %s1 = inlined_call_operand.vmem [shape: s32[8,1], index: 1, kind: input, shape index: {}]
  %s2 = inlined_call_operand.hbm [shape: f32[1,1], index: 2, kind: output, shape index: {}]
  %s3 = sld [smem:[#allocation0]]
  $region18: #{tpu_custom_call.1} parent=0
    _
  %s5 = ssub.s32 1, %s3
  %s6 = scalar_select 0, %s5, %s3
  $region1: #{tpu_custom_call.1} parent=0
    #allocation2 [shape = 'u8[512]{0}', space=smem, size = 0x200, scoped, tag = 'output window, operand 0, single buffered']
    #allocation3 [shape = 's32[1]{0}', space=sflag, size = 0x4, scoped, tag = 'scoped memory for tpu_custom_call.1']
    %7 = vsyncpa [#allocation3], 0
    // Predicated region
    $region2: #{tpu_custom_call.1} parent=1 // pred_check
      _
    $region3: #{tpu_custom_call.1} parent=1 // pred_check_branch
      %9 = sbr.rel (0) target = $region5
    $region4: #{tpu_custom_call.1} parent=1 // pred_region
      _
    $region5: #{tpu_custom_call.1} parent=1 // pred_fallthru
      _
    // Predicated region
    $region6: #{tpu_custom_call.1} parent=1 // pred_check
      _
    $region7: #{tpu_custom_call.1} parent=1 // pred_check_branch
      %11 = sbr.rel (0) target = $region9
    $region8: #{tpu_custom_call.1} parent=1 // pred_region
      _
    $region9: #{tpu_custom_call.1} parent=1 // pred_fallthru
      _
    %v12 = vld [vmem:[%s0] sm:$0xff]
    %v13 = vld [vmem:[%s1] sm:$0xff]
    %vm14 = vcmask 130048
    %v15 = vsel %vm14, %v12, -inf
    %16 = vmax.xlane.f32.xlu0 %v15
    %v17 = vpop.xlane.xlu0 %16
    %v18 = vsub.f32 %v12, %v17
    %v19 = vmul.f32 %v18, 1.442695
    %v20 = vpow.pop %v19
    %v21 = vsel %vm14, %v20, 0.0
    %22 = vadd.xlane.f32.xlu0 %v21
    %v23 = vpop.xlane.xlu0 %22
    %v24 = vlog2.pop %v23
    %v25 = vmul.f32 %v24, 0.6931472
    %v26 = vlaneseq
    %v27 = vand.u32 %v26, 127
    %28 = vset.pattern.permute.xlu0 0
    %29 = vperm.xlu0 %28, %v13
    %v30 = vpop.permute.xlu0 %29
    %vm31 = vcmp.eq.s32.totalorder %v27, %v30
    %v32 = vsel %vm31, %v18, 0.0
    %v33 = vsel %vm14, %v32, 0.0
    %34 = vadd.xlane.f32.xlu0 %v33
    %v35 = vpop.xlane.xlu0 %34
    %v36 = vsel %vm14, %v18, 0.0
    %37 = vadd.xlane.f32.xlu0 %v36
    %v38 = vpop.xlane.xlu0 %37
    %v39 = vsub.f32 %v35, %v25
    %v40 = vmul.f32 %v39, -0.9
    %v41 = vmul.f32 %v25, 16.0
    %v42 = vsub.f32 %v38, %v41
    %v43 = vmul.f32 %v42, 0.00625
    %v44 = vsub.f32 %v40, %v43
    %s45 = smul.u32 0, 8
    %v46 = vlaneseq
    %v47 = vshrl.u32 %v46, 7
    %v48 = vstv %s45
    %v49 = vadd.s32 %v48, %v47
    %vm50 = vcmp.lt.s32.totalorder %v49, 8
    %v51 = vsel %vm50, %v44, 0.0
    %vm52 = vcmask 7168
    %v53 = vsel %vm52, %v51, 0.0
    %54 = vadd.xlane.f32.xlu0 %v53
    %v55 = vpop.xlane.xlu0 %54
    %v56 = vrot.slane %v55, 4
    %v57 = vadd.f32 %v55, %v56
    %v58 = vrot.slane %v57, 2
    %v59 = vadd.f32 %v57, %v58
    %v60 = vrot.slane %v59, 1
    %v61 = vadd.f32 %v59, %v60
    %s62 = vtos %v61
    %s63 = scalar_lea.smem [#allocation2], 0
    %64 = sst [smem:[%s63]] %s62
    // Predicated region
    $region10: #{tpu_custom_call.1} parent=1 // pred_check
      _
    $region11: #{tpu_custom_call.1} parent=1 // pred_check_branch
      %66 = sbr.rel (0) target = $region13
    $region12: #{tpu_custom_call.1} parent=1 // pred_region
      %68 = vsyncadd [#allocation3], 0
      %s70 = sshll.u32 %s2, 4
      %s71 = int_to_ptr.hbm [resolvable:$true] %s70
      %73 = dma.smem_to_hbm [#allocation2], 16, %s71, [#allocation3]
    $region13: #{tpu_custom_call.1} parent=1 // pred_fallthru
      _
    // Predicated region
    $region14: #{tpu_custom_call.1} parent=1 // pred_check
      _
    $region15: #{tpu_custom_call.1} parent=1 // pred_check_branch
      %75 = sbr.rel (0) target = $region17
    $region16: #{tpu_custom_call.1} parent=1 // pred_region
      %77 = dma.done [#allocation3], 16
    $region17: #{tpu_custom_call.1} parent=1 // pred_fallthru
      _
    %78 = sfence
    %79 = vsyncpa [#allocation3], 1

</llo_original>
